<compile_context>
chip_gen: v7x
topology: tpu7x:2x2x1
jax: 0.10.0
libtpu: 0.0.40
codegen_flags: <defaults>
</compile_context>

<pallas_src>
import jax
import jax.numpy as jnp
from jax.experimental import pallas as pl
from jax.experimental.pallas import tpu as pltpu


def _round_up(n, m):
    return ((n + m - 1) // m) * m


# ----------------------------------------------------------------------------
# Kernel
# ----------------------------------------------------------------------------
def crossnet_kernel(xd_ref, xi_ref, w_top_ref, eye_ref, b_in_ref,
                    bn_s_ref, bn_b_ref, cw_ref, cb_ref,
                    wo_ref, bo_ref, o_ref):
    layer_num = cw_ref.shape[0]

    # Fused input projection: [dense Linear | identity pass-through] as two
    # small bf16 MXU matmuls summed (f32 accumulation), then eval-mode BN[0].
    xd = xd_ref[...].astype(jnp.bfloat16)
    xi = xi_ref[...].astype(jnp.bfloat16)
    x = (jnp.dot(xd, w_top_ref[...], preferred_element_type=jnp.float32)
         + jnp.dot(xi, eye_ref[...], preferred_element_type=jnp.float32)
         + b_in_ref[...])
    x = x * bn_s_ref[0:1, :] + bn_b_ref[0:1, :]
    x0 = x

    # Cross layers: xw = <x, w_i> per row (VPU mul + XLU lane reduce),
    # x <- x0 * xw + b_i + x, then eval-mode BN affine.  All f32.
    for i in range(layer_num):
        w_i = cw_ref[i:i + 1, :]                               # (1, Dp)
        xw = jnp.sum(x * w_i, axis=-1, keepdims=True)          # (TB, 1)
        x = x0 * xw + cb_ref[i:i + 1, :] + x
        x = x * bn_s_ref[i + 1:i + 2, :] + bn_b_ref[i + 1:i + 2, :]

    # Output Linear with the final BN affine pre-folded into (wo, bo),
    # bf16 operands / f32 accumulation, then ReLU.  Store only the 32 real
    # output lanes.
    out = jnp.dot(x.astype(jnp.bfloat16), wo_ref[...],
                  preferred_element_type=jnp.float32) + bo_ref[...]
    o_ref[...] = jnp.maximum(out, 0.0).astype(o_ref.dtype)


# ----------------------------------------------------------------------------
# Parameter preparation (fusion + lane padding + dtype choices), done once.
# ----------------------------------------------------------------------------
def prepare_params(p):
    """Split the block-diagonal input projection into (dense weight, shifted
    identity), pad the cross-feature axis to 128 lanes (padded lanes are zero
    everywhere so they stay zero through the recurrence), and fold the final
    BatchNorm affine into the output Linear (exact in f32)."""
    wd = p["wd"]                                  # (dense_in, block_out)
    dense_in, block_out = wd.shape
    D = p["cross_w"].shape[1]                     # block_in * num_inputs
    block_in = D - block_out                      # width of inner pass-through
    Dp = _round_up(D, 128)

    w_top = jnp.zeros((dense_in, Dp), jnp.float32).at[:, :block_out].set(wd)
    eye_shift = jnp.zeros((block_in, Dp), jnp.float32)
    eye_shift = eye_shift.at[:, block_out:block_out + block_in].set(jnp.eye(block_in))
    b_in = jnp.zeros((1, Dp), jnp.float32).at[:, :block_out].set(p["bd"])

    def pad_d(a):                                  # (..., D) -> (..., Dp), zeros
        return jnp.pad(a, ((0, 0), (0, Dp - D)))

    # Fold the final BN affine into the output Linear (exact, f32):
    #   (x @ W + b) * s + t  ==  x @ (W * s) + (b * s + t)
    wout_f = p["wout"] * p["obn_scale"]            # (D, block_out)
    bout_f = p["bout"] * p["obn_scale"] + p["obn_shift"]
    wout_pad = jnp.zeros((Dp, block_out), jnp.float32).at[:D, :].set(wout_f)

    kp = dict(
        w_top=w_top.astype(jnp.bfloat16),          # bf16 MXU operands
        eye_shift=eye_shift.astype(jnp.bfloat16),  # 1.0 is exact in bf16
        b_in=b_in,
        bn_scale=pad_d(p["bn_scale"]),
        bn_shift=pad_d(p["bn_shift"]),
        cross_w=pad_d(p["cross_w"]),
        cross_b=pad_d(p["cross_b"]),
        wout=wout_pad.astype(jnp.bfloat16),        # bf16 MXU operand
        bout=bout_f.reshape(1, block_out).astype(jnp.float32),
    )
    dims = dict(dense_in=dense_in, block_in=block_in, block_out=block_out,
                D=D, Dp=Dp)
    return kp, dims


# ----------------------------------------------------------------------------
# Wrapper
# ----------------------------------------------------------------------------
def crossnet_forward(x_dense_raw, x_inner, kp, dims, *, max_tile=2048):
    """x_dense_raw: (B, num_dense_feats, emb) f32; x_inner: (B, block_in) f32."""
    B = x_dense_raw.shape[0]
    dense_in = dims["dense_in"]
    block_in = dims["block_in"]
    block_out = dims["block_out"]

    # Free row-major collapse; no concat / cast / pad passes over the batch.
    xd = x_dense_raw.reshape(B, dense_in)

    # Batch tile: always >= 2 grid steps (so both v7x TensorCores get work),
    # multiple of 16 rows, capped to amortize per-step overhead.  The ragged
    # last tile is handled by Pallas (masked store; garbage rows discarded).
    TB = min(max_tile, max(16, _round_up(-(-B // 2), 16)))
    n_tiles = pl.cdiv(B, TB)

    def resident(arr):                             # tiny params stay in VMEM
        return pl.BlockSpec(arr.shape, lambda i: (0, 0))

    out = pl.pallas_call(
        crossnet_kernel,
        out_shape=jax.ShapeDtypeStruct((B, block_out), jnp.float32),
        grid=(n_tiles,),
        in_specs=[
            pl.BlockSpec((TB, dense_in), lambda i: (i, 0)),   # batch-tiled dense
            pl.BlockSpec((TB, block_in), lambda i: (i, 0)),   # batch-tiled inner
            resident(kp["w_top"]),
            resident(kp["eye_shift"]),
            resident(kp["b_in"]),
            resident(kp["bn_scale"]),
            resident(kp["bn_shift"]),
            resident(kp["cross_w"]),
            resident(kp["cross_b"]),
            resident(kp["wout"]),
            resident(kp["bout"]),
        ],
        out_specs=pl.BlockSpec((TB, block_out), lambda i: (i, 0)),
        compiler_params=pltpu.CompilerParams(
            dimension_semantics=("parallel",)),               # megacore on v7x
    )(xd, x_inner, kp["w_top"], kp["eye_shift"], kp["b_in"],
      kp["bn_scale"], kp["bn_shift"], kp["cross_w"], kp["cross_b"],
      kp["wout"], kp["bout"])
    return out


# ----------------------------------------------------------------------------
# Pure-JAX matched reference (same bf16 rounding / folds as the kernel).
# ----------------------------------------------------------------------------
def reference_forward_matched(x_dense_raw, x_inner, p):
    B = x_dense_raw.shape[0]
    xd = x_dense_raw.reshape(B, -1).astype(jnp.bfloat16)
    xi = x_inner.astype(jnp.bfloat16).astype(jnp.float32)
    h = jnp.dot(xd, p["wd"].astype(jnp.bfloat16),
                preferred_element_type=jnp.float32) + p["bd"]
    x = jnp.concatenate([h, xi], axis=1)
    x = x * p["bn_scale"][0:1] + p["bn_shift"][0:1]
    x0 = x
    for i in range(p["cross_w"].shape[0]):
        xw = jnp.sum(x * p["cross_w"][i:i + 1], axis=-1, keepdims=True)
        x = x0 * xw + p["cross_b"][i:i + 1] + x
        x = x * p["bn_scale"][i + 1:i + 2] + p["bn_shift"][i + 1:i + 2]
    wout_f = (p["wout"] * p["obn_scale"]).astype(jnp.bfloat16)
    bout_f = p["bout"] * p["obn_scale"] + p["obn_shift"]
    out = jnp.dot(x.astype(jnp.bfloat16), wout_f,
                  preferred_element_type=jnp.float32) + bout_f
    return jnp.maximum(out, 0.0)


def _bn_affine(key, dim, eps=1e-5):
    """Fold eval-mode BatchNorm1d(dim) into per-feature (scale, shift)."""
    k1, k2, k3, k4 = jax.random.split(key, 4)
    gamma = jax.random.uniform(k1, (dim,), minval=0.5, maxval=1.5)
    beta = 0.1 * jax.random.normal(k2, (dim,))
    running_mean = 0.1 * jax.random.normal(k3, (dim,))
    running_var = jax.random.uniform(k4, (dim,), minval=0.5, maxval=1.5)
    scale = gamma * jax.lax.rsqrt(running_var + eps)
    shift = beta - running_mean * scale
    return scale.astype(jnp.float32), shift.astype(jnp.float32)


if __name__ == "__main__":
    # Module hyper-params (small, consistent with the torch module).
    LAYER_NUM = 3
    B = 40                                   # exercises multi-tile grid + ragged tile
    embedding_dim = 8
    num_dense_feats = 4
    dense_in = num_dense_feats * embedding_dim      # params['raw_dense_linear'] = 32
    block_in_dim = 32
    num_inputs = 2                                  # [raw-dense, inner-block]
    D = block_in_dim * num_inputs                   # 64
    block_out_dim = 32                              # == block_in_dim so concat matches

    key = jax.random.PRNGKey(0)
    keys = jax.random.split(key, 12)

    # Inputs.
    x_dense_raw = jax.random.normal(keys[0], (B, num_dense_feats, embedding_dim),
                                    dtype=jnp.float32)
    x_inner = jax.random.normal(keys[1], (B, block_in_dim), dtype=jnp.float32)

    # Parameters (deterministic synthetic init, original-module layout).
    params = {}
    params["wd"] = (jax.random.normal(keys[2], (dense_in, block_out_dim)) /
                    jnp.sqrt(dense_in)).astype(jnp.float32)
    params["bd"] = (0.01 * jax.random.normal(keys[3], (1, block_out_dim))).astype(jnp.float32)

    params["cross_w"] = (jax.random.uniform(keys[4], (LAYER_NUM, D),
                                            minval=-1.0, maxval=1.0) *
                         jnp.sqrt(6.0 / (LAYER_NUM + D))).astype(jnp.float32)
    params["cross_b"] = jnp.zeros((LAYER_NUM, D), dtype=jnp.float32)

    bn_s, bn_b = [], []
    for i in range(LAYER_NUM + 1):
        s, sh = _bn_affine(jax.random.fold_in(keys[5], i), D)
        bn_s.append(s); bn_b.append(sh)
    params["bn_scale"] = jnp.stack(bn_s, axis=0)          # (LAYER_NUM+1, D)
    params["bn_shift"] = jnp.stack(bn_b, axis=0)

    params["wout"] = (jax.random.normal(keys[6], (D, block_out_dim)) /
                      jnp.sqrt(D)).astype(jnp.float32)
    params["bout"] = (0.01 * jax.random.normal(keys[7], (1, block_out_dim))).astype(jnp.float32)
    os_, ob_ = _bn_affine(keys[8], block_out_dim)
    params["obn_scale"] = os_.reshape(1, block_out_dim)
    params["obn_shift"] = ob_.reshape(1, block_out_dim)

    # Prepare fused/padded kernel params and run.
    kp, dims = prepare_params(params)
    out = crossnet_forward(x_dense_raw, x_inner, kp, dims)
    out = jax.block_until_ready(out)

    ref = reference_forward_matched(x_dense_raw, x_inner, params)
    assert out.shape == (B, block_out_dim), out.shape
    assert jnp.allclose(out, ref, rtol=2e-3, atol=2e-3), \
        f"max abs diff {jnp.max(jnp.abs(out - ref))}"

    print("KERNEL_OK")
</pallas_src>

<mosaic_0001>
module attributes {stable_mosaic.version = 11 : i64} {
  func.func @crossnet_kernel(%arg0: i32, %arg1: memref<32x32xf32, #tpu.memory_space<vmem>>, %arg2: memref<32x32xf32, #tpu.memory_space<vmem>>, %arg3: memref<32x128xbf16, #tpu.memory_space<vmem>>, %arg4: memref<32x128xbf16, #tpu.memory_space<vmem>>, %arg5: memref<1x128xf32, #tpu.memory_space<vmem>>, %arg6: memref<4x128xf32, #tpu.memory_space<vmem>>, %arg7: memref<4x128xf32, #tpu.memory_space<vmem>>, %arg8: memref<3x128xf32, #tpu.memory_space<vmem>>, %arg9: memref<3x128xf32, #tpu.memory_space<vmem>>, %arg10: memref<128x32xbf16, #tpu.memory_space<vmem>>, %arg11: memref<1x32xf32, #tpu.memory_space<vmem>>, %arg12: memref<32x32xf32, #tpu.memory_space<vmem>>) attributes {dimension_semantics = [#tpu.dimension_semantics<parallel>], iteration_bounds = array<i64: 2>, scalar_prefetch = 0 : i64, scratch_operands = 0 : i64, tpu.core_type = #tpu.core_type<tc>, window_params = [{transform_indices = @transform_0, window_bounds = array<i64: 32, 32>}, {transform_indices = @transform_1, window_bounds = array<i64: 32, 32>}, {pipeline_mode = #tpu.pipeline_mode<synchronous>, transform_indices = @transform_2, window_bounds = array<i64: 32, 128>}, {pipeline_mode = #tpu.pipeline_mode<synchronous>, transform_indices = @transform_3, window_bounds = array<i64: 32, 128>}, {pipeline_mode = #tpu.pipeline_mode<synchronous>, transform_indices = @transform_4, window_bounds = array<i64: 1, 128>}, {pipeline_mode = #tpu.pipeline_mode<synchronous>, transform_indices = @transform_5, window_bounds = array<i64: 4, 128>}, {pipeline_mode = #tpu.pipeline_mode<synchronous>, transform_indices = @transform_6, window_bounds = array<i64: 4, 128>}, {pipeline_mode = #tpu.pipeline_mode<synchronous>, transform_indices = @transform_7, window_bounds = array<i64: 3, 128>}, {pipeline_mode = #tpu.pipeline_mode<synchronous>, transform_indices = @transform_8, window_bounds = array<i64: 3, 128>}, {pipeline_mode = #tpu.pipeline_mode<synchronous>, transform_indices = @transform_9, window_bounds = array<i64: 128, 32>}, {pipeline_mode = #tpu.pipeline_mode<synchronous>, transform_indices = @transform_10, window_bounds = array<i64: 1, 32>}, {transform_indices = @transform_11, window_bounds = array<i64: 32, 32>}]} {
    %c0 = arith.constant 0 : index
    %c0_0 = arith.constant 0 : index
    %0 = vector.load %arg1[%c0, %c0_0] : memref<32x32xf32, #tpu.memory_space<vmem>>, vector<32x32xf32>
    %1 = arith.truncf %0 : vector<32x32xf32> to vector<32x32xbf16>
    %c0_1 = arith.constant 0 : index
    %c0_2 = arith.constant 0 : index
    %2 = vector.load %arg2[%c0_1, %c0_2] : memref<32x32xf32, #tpu.memory_space<vmem>>, vector<32x32xf32>
    %3 = arith.truncf %2 : vector<32x32xf32> to vector<32x32xbf16>
    %c0_3 = arith.constant 0 : index
    %c0_4 = arith.constant 0 : index
    %4 = vector.load %arg3[%c0_3, %c0_4] : memref<32x128xbf16, #tpu.memory_space<vmem>>, vector<32x128xbf16>
    %cst = arith.constant dense<0.000000e+00> : vector<32x128xf32>
    %5 = tpu.matmul %1, %4, %cst {dimension_numbers = #tpu.dot_dimension_numbers<[1], [0], [0], [1], [0, 0, 1, 1], [], []>} : vector<32x32xbf16>, vector<32x128xbf16>, vector<32x128xf32> -> vector<32x128xf32>
    %c0_5 = arith.constant 0 : index
    %c0_6 = arith.constant 0 : index
    %6 = vector.load %arg4[%c0_5, %c0_6] : memref<32x128xbf16, #tpu.memory_space<vmem>>, vector<32x128xbf16>
    %cst_7 = arith.constant dense<0.000000e+00> : vector<32x128xf32>
    %7 = tpu.matmul %3, %6, %cst_7 {dimension_numbers = #tpu.dot_dimension_numbers<[1], [0], [0], [1], [0, 0, 1, 1], [], []>} : vector<32x32xbf16>, vector<32x128xbf16>, vector<32x128xf32> -> vector<32x128xf32>
    %8 = arith.addf %5, %7 : vector<32x128xf32>
    %c0_8 = arith.constant 0 : index
    %c0_9 = arith.constant 0 : index
    %9 = vector.load %arg5[%c0_8, %c0_9] : memref<1x128xf32, #tpu.memory_space<vmem>>, vector<1x128xf32>
    %10 = vector.broadcast %9 : vector<1x128xf32> to vector<32x128xf32>
    %11 = arith.addf %8, %10 : vector<32x128xf32>
    %c0_10 = arith.constant 0 : index
    %c0_11 = arith.constant 0 : index
    %12 = vector.load %arg6[%c0_10, %c0_11] : memref<4x128xf32, #tpu.memory_space<vmem>>, vector<1x128xf32>
    %13 = vector.broadcast %12 : vector<1x128xf32> to vector<32x128xf32>
    %14 = arith.mulf %11, %13 : vector<32x128xf32>
    %c0_12 = arith.constant 0 : index
    %c0_13 = arith.constant 0 : index
    %15 = vector.load %arg7[%c0_12, %c0_13] : memref<4x128xf32, #tpu.memory_space<vmem>>, vector<1x128xf32>
    %16 = vector.broadcast %15 : vector<1x128xf32> to vector<32x128xf32>
    %17 = arith.addf %14, %16 : vector<32x128xf32>
    %c0_14 = arith.constant 0 : index
    %c0_15 = arith.constant 0 : index
    %18 = vector.load %arg8[%c0_14, %c0_15] : memref<3x128xf32, #tpu.memory_space<vmem>>, vector<1x128xf32>
    %19 = vector.broadcast %18 : vector<1x128xf32> to vector<32x128xf32>
    %20 = arith.mulf %17, %19 : vector<32x128xf32>
    %cst_16 = arith.constant dense<0.000000e+00> : vector<32xf32>
    %21 = vector.multi_reduction <add>, %20, %cst_16 [1] : vector<32x128xf32> to vector<32xf32>
    %22 = vector.shape_cast %21 : vector<32xf32> to vector<32x1xf32>
    %23 = vector.broadcast %22 : vector<32x1xf32> to vector<32x128xf32>
    %24 = arith.mulf %17, %23 : vector<32x128xf32>
    %c0_17 = arith.constant 0 : index
    %c0_18 = arith.constant 0 : index
    %25 = vector.load %arg9[%c0_17, %c0_18] : memref<3x128xf32, #tpu.memory_space<vmem>>, vector<1x128xf32>
    %26 = vector.broadcast %25 : vector<1x128xf32> to vector<32x128xf32>
    %27 = arith.addf %24, %26 : vector<32x128xf32>
    %28 = arith.addf %27, %17 : vector<32x128xf32>
    %c1 = arith.constant 1 : index
    %c0_19 = arith.constant 0 : index
    %29 = vector.load %arg6[%c1, %c0_19] : memref<4x128xf32, #tpu.memory_space<vmem>>, vector<1x128xf32>
    %30 = vector.broadcast %29 : vector<1x128xf32> to vector<32x128xf32>
    %31 = arith.mulf %28, %30 : vector<32x128xf32>
    %c1_20 = arith.constant 1 : index
    %c0_21 = arith.constant 0 : index
    %32 = vector.load %arg7[%c1_20, %c0_21] : memref<4x128xf32, #tpu.memory_space<vmem>>, vector<1x128xf32>
    %33 = vector.broadcast %32 : vector<1x128xf32> to vector<32x128xf32>
    %34 = arith.addf %31, %33 : vector<32x128xf32>
    %c1_22 = arith.constant 1 : index
    %c0_23 = arith.constant 0 : index
    %35 = vector.load %arg8[%c1_22, %c0_23] : memref<3x128xf32, #tpu.memory_space<vmem>>, vector<1x128xf32>
    %36 = vector.broadcast %35 : vector<1x128xf32> to vector<32x128xf32>
    %37 = arith.mulf %34, %36 : vector<32x128xf32>
    %cst_24 = arith.constant dense<0.000000e+00> : vector<32xf32>
    %38 = vector.multi_reduction <add>, %37, %cst_24 [1] : vector<32x128xf32> to vector<32xf32>
    %39 = vector.shape_cast %38 : vector<32xf32> to vector<32x1xf32>
    %40 = vector.broadcast %39 : vector<32x1xf32> to vector<32x128xf32>
    %41 = arith.mulf %17, %40 : vector<32x128xf32>
    %c1_25 = arith.constant 1 : index
    %c0_26 = arith.constant 0 : index
    %42 = vector.load %arg9[%c1_25, %c0_26] : memref<3x128xf32, #tpu.memory_space<vmem>>, vector<1x128xf32>
    %43 = vector.broadcast %42 : vector<1x128xf32> to vector<32x128xf32>
    %44 = arith.addf %41, %43 : vector<32x128xf32>
    %45 = arith.addf %44, %34 : vector<32x128xf32>
    %c2 = arith.constant 2 : index
    %c0_27 = arith.constant 0 : index
    %46 = vector.load %arg6[%c2, %c0_27] : memref<4x128xf32, #tpu.memory_space<vmem>>, vector<1x128xf32>
    %47 = vector.broadcast %46 : vector<1x128xf32> to vector<32x128xf32>
    %48 = arith.mulf %45, %47 : vector<32x128xf32>
    %c2_28 = arith.constant 2 : index
    %c0_29 = arith.constant 0 : index
    %49 = vector.load %arg7[%c2_28, %c0_29] : memref<4x128xf32, #tpu.memory_space<vmem>>, vector<1x128xf32>
    %50 = vector.broadcast %49 : vector<1x128xf32> to vector<32x128xf32>
    %51 = arith.addf %48, %50 : vector<32x128xf32>
    %c2_30 = arith.constant 2 : index
    %c0_31 = arith.constant 0 : index
    %52 = vector.load %arg8[%c2_30, %c0_31] : memref<3x128xf32, #tpu.memory_space<vmem>>, vector<1x128xf32>
    %53 = vector.broadcast %52 : vector<1x128xf32> to vector<32x128xf32>
    %54 = arith.mulf %51, %53 : vector<32x128xf32>
    %cst_32 = arith.constant dense<0.000000e+00> : vector<32xf32>
    %55 = vector.multi_reduction <add>, %54, %cst_32 [1] : vector<32x128xf32> to vector<32xf32>
    %56 = vector.shape_cast %55 : vector<32xf32> to vector<32x1xf32>
    %57 = vector.broadcast %56 : vector<32x1xf32> to vector<32x128xf32>
    %58 = arith.mulf %17, %57 : vector<32x128xf32>
    %c2_33 = arith.constant 2 : index
    %c0_34 = arith.constant 0 : index
    %59 = vector.load %arg9[%c2_33, %c0_34] : memref<3x128xf32, #tpu.memory_space<vmem>>, vector<1x128xf32>
    %60 = vector.broadcast %59 : vector<1x128xf32> to vector<32x128xf32>
    %61 = arith.addf %58, %60 : vector<32x128xf32>
    %62 = arith.addf %61, %51 : vector<32x128xf32>
    %c3 = arith.constant 3 : index
    %c0_35 = arith.constant 0 : index
    %63 = vector.load %arg6[%c3, %c0_35] : memref<4x128xf32, #tpu.memory_space<vmem>>, vector<1x128xf32>
    %64 = vector.broadcast %63 : vector<1x128xf32> to vector<32x128xf32>
    %65 = arith.mulf %62, %64 : vector<32x128xf32>
    %c3_36 = arith.constant 3 : index
    %c0_37 = arith.constant 0 : index
    %66 = vector.load %arg7[%c3_36, %c0_37] : memref<4x128xf32, #tpu.memory_space<vmem>>, vector<1x128xf32>
    %67 = vector.broadcast %66 : vector<1x128xf32> to vector<32x128xf32>
    %68 = arith.addf %65, %67 : vector<32x128xf32>
    %69 = arith.truncf %68 : vector<32x128xf32> to vector<32x128xbf16>
    %c0_38 = arith.constant 0 : index
    %c0_39 = arith.constant 0 : index
    %70 = vector.load %arg10[%c0_38, %c0_39] : memref<128x32xbf16, #tpu.memory_space<vmem>>, vector<128x32xbf16>
    %cst_40 = arith.constant dense<0.000000e+00> : vector<32x32xf32>
    %71 = tpu.matmul %69, %70, %cst_40 {dimension_numbers = #tpu.dot_dimension_numbers<[1], [0], [0], [1], [0, 0, 1, 1], [], []>} : vector<32x128xbf16>, vector<128x32xbf16>, vector<32x32xf32> -> vector<32x32xf32>
    %c0_41 = arith.constant 0 : index
    %c0_42 = arith.constant 0 : index
    %72 = vector.load %arg11[%c0_41, %c0_42] : memref<1x32xf32, #tpu.memory_space<vmem>>, vector<1x32xf32>
    %73 = vector.broadcast %72 : vector<1x32xf32> to vector<32x32xf32>
    %74 = arith.addf %71, %73 : vector<32x32xf32>
    %cst_43 = arith.constant 0.000000e+00 : f32
    %75 = vector.broadcast %cst_43 : f32 to vector<32x32xf32>
    %76 = arith.maximumf %74, %75 : vector<32x32xf32>
    %c0_44 = arith.constant 0 : index
    %c0_45 = arith.constant 0 : index
    %77 = vector.load %arg12[%c0_44, %c0_45] : memref<32x32xf32, #tpu.memory_space<vmem>>, vector<32x32xf32>
    tpu.vector_store %arg12[%c0_44, %c0_45], %76 {strides = array<i32>} : memref<32x32xf32, #tpu.memory_space<vmem>>, vector<32x32xf32>,
    return
  }
  func.func @transform_0(%arg0: i32) -> (i32, i32) {
    %c0_i32 = arith.constant 0 : i32
    %c0_i32_0 = arith.constant 0 : i32
    return %arg0, %c0_i32 : i32, i32
  }
  func.func @transform_1(%arg0: i32) -> (i32, i32) {
    %c0_i32 = arith.constant 0 : i32
    %c0_i32_0 = arith.constant 0 : i32
    return %arg0, %c0_i32 : i32, i32
  }
  func.func @transform_2(%arg0: i32) -> (i32, i32) {
    %c0_i32 = arith.constant 0 : i32
    %c0_i32_0 = arith.constant 0 : i32
    %c0_i32_1 = arith.constant 0 : i32
    return %c0_i32, %c0_i32_0 : i32, i32
  }
  func.func @transform_3(%arg0: i32) -> (i32, i32) {
    %c0_i32 = arith.constant 0 : i32
    %c0_i32_0 = arith.constant 0 : i32
    %c0_i32_1 = arith.constant 0 : i32
    return %c0_i32, %c0_i32_0 : i32, i32
  }
  func.func @transform_4(%arg0: i32) -> (i32, i32) {
    %c0_i32 = arith.constant 0 : i32
    %c0_i32_0 = arith.constant 0 : i32
    %c0_i32_1 = arith.constant 0 : i32
    return %c0_i32, %c0_i32_0 : i32, i32
  }
  func.func @transform_5(%arg0: i32) -> (i32, i32) {
    %c0_i32 = arith.constant 0 : i32
    %c0_i32_0 = arith.constant 0 : i32
    %c0_i32_1 = arith.constant 0 : i32
    return %c0_i32, %c0_i32_0 : i32, i32
  }
  func.func @transform_6(%arg0: i32) -> (i32, i32) {
    %c0_i32 = arith.constant 0 : i32
    %c0_i32_0 = arith.constant 0 : i32
    %c0_i32_1 = arith.constant 0 : i32
    return %c0_i32, %c0_i32_0 : i32, i32
  }
  func.func @transform_7(%arg0: i32) -> (i32, i32) {
    %c0_i32 = arith.constant 0 : i32
    %c0_i32_0 = arith.constant 0 : i32
    %c0_i32_1 = arith.constant 0 : i32
    return %c0_i32, %c0_i32_0 : i32, i32
  }
  func.func @transform_8(%arg0: i32) -> (i32, i32) {
    %c0_i32 = arith.constant 0 : i32
    %c0_i32_0 = arith.constant 0 : i32
    %c0_i32_1 = arith.constant 0 : i32
    return %c0_i32, %c0_i32_0 : i32, i32
  }
  func.func @transform_9(%arg0: i32) -> (i32, i32) {
    %c0_i32 = arith.constant 0 : i32
    %c0_i32_0 = arith.constant 0 : i32
    %c0_i32_1 = arith.constant 0 : i32
    return %c0_i32, %c0_i32_0 : i32, i32
  }
  func.func @transform_10(%arg0: i32) -> (i32, i32) {
    %c0_i32 = arith.constant 0 : i32
    %c0_i32_0 = arith.constant 0 : i32
    %c0_i32_1 = arith.constant 0 : i32
    return %c0_i32, %c0_i32_0 : i32, i32
  }
  func.func @transform_11(%arg0: i32) -> (i32, i32) {
    %c0_i32 = arith.constant 0 : i32
    %c0_i32_0 = arith.constant 0 : i32
    return %arg0, %c0_i32 : i32, i32
  }
}

</mosaic_0001>

<llo_original>
// kernel: tpu_custom_call.1
$region0: #{tpu_custom_call.1}
  #allocation0 [shape = 'u32[]', space=smem, size = 0x4, offset = 0x4, fixed_abs, tag = 'smem constant byte address 0x4 - core index']
  #allocation1 [shape = 'u32[144,128]{1,0:T(1,128)}', space=vmem, size = 0x12000, scoped, tag = 'internal scratch']
  %s0 = inlined_call_operand.vmem [shape: f32[40,32], index: 0, kind: input, shape index: {}]
  %s1 = inlined_call_operand.vmem [shape: f32[40,32], index: 1, kind: input, shape index: {}]
  %s2 = inlined_call_operand.vmem [shape: bf16[32,128], index: 2, kind: input, shape index: {}]
  %s3 = inlined_call_operand.vmem [shape: bf16[32,128], index: 3, kind: input, shape index: {}]
  %s4 = inlined_call_operand.vmem [shape: f32[1,128], index: 4, kind: input, shape index: {}]
  %s5 = inlined_call_operand.vmem [shape: f32[4,128], index: 5, kind: input, shape index: {}]
  %s6 = inlined_call_operand.vmem [shape: f32[4,128], index: 6, kind: input, shape index: {}]
  %s7 = inlined_call_operand.vmem [shape: f32[3,128], index: 7, kind: input, shape index: {}]
  %s8 = inlined_call_operand.vmem [shape: f32[3,128], index: 8, kind: input, shape index: {}]
  %s9 = inlined_call_operand.vmem [shape: bf16[128,32], index: 9, kind: input, shape index: {}]
  %s10 = inlined_call_operand.vmem [shape: f32[1,32], index: 10, kind: input, shape index: {}]
  %s11 = inlined_call_operand.vmem [shape: f32[40,32], index: 11, kind: output, shape index: {}]
  %s12 = sld [smem:[#allocation0]]
  $region125: #{tpu_custom_call.1} parent=0
    _
  %s14 = ssub.s32 1, %s12
  %s15 = scalar_select 0, %s14, %s12
  $region1: #{tpu_custom_call.1} parent=0
    #allocation2 [shape = 'u8[32768]{0}', space=vmem, size = 0x8000, scoped, tag = 'output window, operand 0']
    loop: start=0, step=1, limit=4
    $region2: #{tpu_custom_call.1} parent=1 // loop_pre_header
      _
    $region3: #{tpu_custom_call.1} parent=1 // loop_header
      %s17 = sphi 0, %s21
      %p18 = scmp.ge.s32.totalorder %s17, 4
      %s27 = sphi 0, %s29
      %s30 = sphi 0, %s27
      %s31 = sphi 0, %s30
      %s47 = sphi 0, %s31
      %s53 = sphi 0, %s55
      %s56 = sphi 0, %s53
      %s57 = sphi 0, %s56
      %s73 = sphi 0, %s57
      %s77 = sphi 0, %s77
      %s79 = sphi 0, %s77
      %s80 = sphi 0, %s79
      %s94 = sphi 0, %s80
      %s98 = sphi 0, %s98
      %s100 = sphi 0, %s98
      %s101 = sphi 0, %s100
      %s115 = sphi 0, %s101
      %s119 = sphi 0, %s119
      %s121 = sphi 0, %s119
      %s122 = sphi 0, %s121
      %s136 = sphi 0, %s122
      %s140 = sphi 0, %s140
      %s142 = sphi 0, %s140
      %s143 = sphi 0, %s142
      %s157 = sphi 0, %s143
      %s161 = sphi 0, %s161
      %s163 = sphi 0, %s161
      %s164 = sphi 0, %s163
      %s178 = sphi 0, %s164
      %s182 = sphi 0, %s182
      %s184 = sphi 0, %s182
      %s185 = sphi 0, %s184
      %s199 = sphi 0, %s185
      %s203 = sphi 0, %s203
      %s205 = sphi 0, %s203
      %s206 = sphi 0, %s205
      %s220 = sphi 0, %s206
      %s224 = sphi 0, %s224
      %s226 = sphi 0, %s224
      %s227 = sphi 0, %s226
      %s241 = sphi 0, %s227
      %s245 = sphi 0, %s245
      %s247 = sphi 0, %s245
      %s248 = sphi 0, %s247
      %s262 = sphi 0, %s248
      %s268 = sphi 0, %s270
      %s271 = sphi 0, %s268
      %s272 = sphi 0, %s271
      %s288 = sphi 0, %s272
    $region4: #{tpu_custom_call.1} parent=1 // loop_header_branch
      %20 = sbr.rel (%p18) target = $region8
    $region5: #{tpu_custom_call.1} parent=1 // loop_body
      %s22 = ssub.s32 %s17, 1
      %s23 = ssub.s32 %s17, 2
      %s24 = sadd.s32 %s17, 1
      %s25 = ssub.s32 %s17, %s24
      %p26 = scmp.eq.s32.totalorder %s25, 0
      %s28 = sadd.s32 %s27, 1
      %s29 = scalar_select %p26, %s27, %s28
      %p32 = pneg %p26
      %p33 = scmp.eq.s32.totalorder %s17, 1
      %p34 = por %p32, %p33
      %p35 = scmp.ne.s32.totalorder %s27, %s30
      %p36 = scmp.eq.s32.totalorder %s17, 0
      %p37 = por %p35, %p36
      %p38 = scmp.ne.s32.totalorder %s27, %s30
      %p39 = scmp.eq.s32.totalorder %s22, 1
      %p40 = por %p38, %p39
      %p41 = scmp.ne.s32.totalorder %s30, %s31
      %p42 = scmp.eq.s32.totalorder %s22, 0
      %p43 = por %p41, %p42
      %p44 = scmp.ne.s32.totalorder %s30, %s31
      %p45 = scmp.eq.s32.totalorder %s23, 1
      %p46 = por %p44, %p45
      %p48 = scmp.ne.s32.totalorder %s31, %s47
      %p49 = scmp.eq.s32.totalorder %s23, 0
      %p50 = por %p48, %p49
      %s51 = ssub.s32 %s17, %s24
      %p52 = scmp.eq.s32.totalorder %s51, 0
      %s54 = sadd.s32 %s53, 1
      %s55 = scalar_select %p52, %s53, %s54
      %p58 = pneg %p52
      %p59 = scmp.eq.s32.totalorder %s17, 1
      %p60 = por %p58, %p59
      %p61 = scmp.ne.s32.totalorder %s53, %s56
      %p62 = scmp.eq.s32.totalorder %s17, 0
      %p63 = por %p61, %p62
      %p64 = scmp.ne.s32.totalorder %s53, %s56
      %p65 = scmp.eq.s32.totalorder %s22, 1
      %p66 = por %p64, %p65
      %p67 = scmp.ne.s32.totalorder %s56, %s57
      %p68 = scmp.eq.s32.totalorder %s22, 0
      %p69 = por %p67, %p68
      %p70 = scmp.ne.s32.totalorder %s56, %s57
      %p71 = scmp.eq.s32.totalorder %s23, 1
      %p72 = por %p70, %p71
      %p74 = scmp.ne.s32.totalorder %s57, %s73
      %p75 = scmp.eq.s32.totalorder %s23, 0
      %p76 = por %p74, %p75
      %s78 = sadd.s32 %s77, 1
      %p81 = scmp.eq.s32.totalorder %s17, 1
      %p82 = scmp.ne.s32.totalorder %s77, %s79
      %p83 = scmp.eq.s32.totalorder %s17, 0
      %p84 = por %p82, %p83
      %p85 = scmp.ne.s32.totalorder %s77, %s79
      %p86 = scmp.eq.s32.totalorder %s22, 1
      %p87 = por %p85, %p86
      %p88 = scmp.ne.s32.totalorder %s79, %s80
      %p89 = scmp.eq.s32.totalorder %s22, 0
      %p90 = por %p88, %p89
      %p91 = scmp.ne.s32.totalorder %s79, %s80
      %p92 = scmp.eq.s32.totalorder %s23, 1
      %p93 = por %p91, %p92
      %p95 = scmp.ne.s32.totalorder %s80, %s94
      %p96 = scmp.eq.s32.totalorder %s23, 0
      %p97 = por %p95, %p96
      %s99 = sadd.s32 %s98, 1
      %p102 = scmp.eq.s32.totalorder %s17, 1
      %p103 = scmp.ne.s32.totalorder %s98, %s100
      %p104 = scmp.eq.s32.totalorder %s17, 0
      %p105 = por %p103, %p104
      %p106 = scmp.ne.s32.totalorder %s98, %s100
      %p107 = scmp.eq.s32.totalorder %s22, 1
      %p108 = por %p106, %p107
      %p109 = scmp.ne.s32.totalorder %s100, %s101
      %p110 = scmp.eq.s32.totalorder %s22, 0
      %p111 = por %p109, %p110
      %p112 = scmp.ne.s32.totalorder %s100, %s101
      %p113 = scmp.eq.s32.totalorder %s23, 1
      %p114 = por %p112, %p113
      %p116 = scmp.ne.s32.totalorder %s101, %s115
      %p117 = scmp.eq.s32.totalorder %s23, 0
      %p118 = por %p116, %p117
      %s120 = sadd.s32 %s119, 1
      %p123 = scmp.eq.s32.totalorder %s17, 1
      %p124 = scmp.ne.s32.totalorder %s119, %s121
      %p125 = scmp.eq.s32.totalorder %s17, 0
      %p126 = por %p124, %p125
      %p127 = scmp.ne.s32.totalorder %s119, %s121
      %p128 = scmp.eq.s32.totalorder %s22, 1
      %p129 = por %p127, %p128
      %p130 = scmp.ne.s32.totalorder %s121, %s122
      %p131 = scmp.eq.s32.totalorder %s22, 0
      %p132 = por %p130, %p131
      %p133 = scmp.ne.s32.totalorder %s121, %s122
      %p134 = scmp.eq.s32.totalorder %s23, 1
      %p135 = por %p133, %p134
      %p137 = scmp.ne.s32.totalorder %s122, %s136
      %p138 = scmp.eq.s32.totalorder %s23, 0
      %p139 = por %p137, %p138
      %s141 = sadd.s32 %s140, 1
      %p144 = scmp.eq.s32.totalorder %s17, 1
      %p145 = scmp.ne.s32.totalorder %s140, %s142
      %p146 = scmp.eq.s32.totalorder %s17, 0
      %p147 = por %p145, %p146
      %p148 = scmp.ne.s32.totalorder %s140, %s142
      %p149 = scmp.eq.s32.totalorder %s22, 1
      %p150 = por %p148, %p149
      %p151 = scmp.ne.s32.totalorder %s142, %s143
      %p152 = scmp.eq.s32.totalorder %s22, 0
      %p153 = por %p151, %p152
      %p154 = scmp.ne.s32.totalorder %s142, %s143
      %p155 = scmp.eq.s32.totalorder %s23, 1
      %p156 = por %p154, %p155
      %p158 = scmp.ne.s32.totalorder %s143, %s157
      %p159 = scmp.eq.s32.totalorder %s23, 0
      %p160 = por %p158, %p159
      %s162 = sadd.s32 %s161, 1
      %p165 = scmp.eq.s32.totalorder %s17, 1
      %p166 = scmp.ne.s32.totalorder %s161, %s163
      %p167 = scmp.eq.s32.totalorder %s17, 0
      %p168 = por %p166, %p167
      %p169 = scmp.ne.s32.totalorder %s161, %s163
      %p170 = scmp.eq.s32.totalorder %s22, 1
      %p171 = por %p169, %p170
      %p172 = scmp.ne.s32.totalorder %s163, %s164
      %p173 = scmp.eq.s32.totalorder %s22, 0
      %p174 = por %p172, %p173
      %p175 = scmp.ne.s32.totalorder %s163, %s164
      %p176 = scmp.eq.s32.totalorder %s23, 1
      %p177 = por %p175, %p176
      %p179 = scmp.ne.s32.totalorder %s164, %s178
      %p180 = scmp.eq.s32.totalorder %s23, 0
      %p181 = por %p179, %p180
      %s183 = sadd.s32 %s182, 1
      %p186 = scmp.eq.s32.totalorder %s17, 1
      %p187 = scmp.ne.s32.totalorder %s182, %s184
      %p188 = scmp.eq.s32.totalorder %s17, 0
      %p189 = por %p187, %p188
      %p190 = scmp.ne.s32.totalorder %s182, %s184
      %p191 = scmp.eq.s32.totalorder %s22, 1
      %p192 = por %p190, %p191
      %p193 = scmp.ne.s32.totalorder %s184, %s185
      %p194 = scmp.eq.s32.totalorder %s22, 0
      %p195 = por %p193, %p194
      %p196 = scmp.ne.s32.totalorder %s184, %s185
      %p197 = scmp.eq.s32.totalorder %s23, 1
      %p198 = por %p196, %p197
      %p200 = scmp.ne.s32.totalorder %s185, %s199
      %p201 = scmp.eq.s32.totalorder %s23, 0
      %p202 = por %p200, %p201
      %s204 = sadd.s32 %s203, 1
      %p207 = scmp.eq.s32.totalorder %s17, 1
      %p208 = scmp.ne.s32.totalorder %s203, %s205
      %p209 = scmp.eq.s32.totalorder %s17, 0
      %p210 = por %p208, %p209
      %p211 = scmp.ne.s32.totalorder %s203, %s205
      %p212 = scmp.eq.s32.totalorder %s22, 1
      %p213 = por %p211, %p212
      %p214 = scmp.ne.s32.totalorder %s205, %s206
      %p215 = scmp.eq.s32.totalorder %s22, 0
      %p216 = por %p214, %p215
      %p217 = scmp.ne.s32.totalorder %s205, %s206
      %p218 = scmp.eq.s32.totalorder %s23, 1
      %p219 = por %p217, %p218
      %p221 = scmp.ne.s32.totalorder %s206, %s220
      %p222 = scmp.eq.s32.totalorder %s23, 0
      %p223 = por %p221, %p222
      %s225 = sadd.s32 %s224, 1
      %p228 = scmp.eq.s32.totalorder %s17, 1
      %p229 = scmp.ne.s32.totalorder %s224, %s226
      %p230 = scmp.eq.s32.totalorder %s17, 0
      %p231 = por %p229, %p230
      %p232 = scmp.ne.s32.totalorder %s224, %s226
      %p233 = scmp.eq.s32.totalorder %s22, 1
      %p234 = por %p232, %p233
      %p235 = scmp.ne.s32.totalorder %s226, %s227
      %p236 = scmp.eq.s32.totalorder %s22, 0
      %p237 = por %p235, %p236
      %p238 = scmp.ne.s32.totalorder %s226, %s227
      %p239 = scmp.eq.s32.totalorder %s23, 1
      %p240 = por %p238, %p239
      %p242 = scmp.ne.s32.totalorder %s227, %s241
      %p243 = scmp.eq.s32.totalorder %s23, 0
      %p244 = por %p242, %p243
      %s246 = sadd.s32 %s245, 1
      %p249 = scmp.eq.s32.totalorder %s17, 1
      %p250 = scmp.ne.s32.totalorder %s245, %s247
      %p251 = scmp.eq.s32.totalorder %s17, 0
      %p252 = por %p250, %p251
      %p253 = scmp.ne.s32.totalorder %s245, %s247
      %p254 = scmp.eq.s32.totalorder %s22, 1
      %p255 = por %p253, %p254
      %p256 = scmp.ne.s32.totalorder %s247, %s248
      %p257 = scmp.eq.s32.totalorder %s22, 0
      %p258 = por %p256, %p257
      %p259 = scmp.ne.s32.totalorder %s247, %s248
      %p260 = scmp.eq.s32.totalorder %s23, 1
      %p261 = por %p259, %p260
      %p263 = scmp.ne.s32.totalorder %s248, %s262
      %p264 = scmp.eq.s32.totalorder %s23, 0
      %p265 = por %p263, %p264
      %s266 = ssub.s32 %s17, %s24
      %p267 = scmp.eq.s32.totalorder %s266, 0
      %s269 = sadd.s32 %s268, 1
      %s270 = scalar_select %p267, %s268, %s269
      %p273 = pneg %p267
      %p274 = scmp.eq.s32.totalorder %s17, 1
      %p275 = por %p273, %p274
      %p276 = scmp.ne.s32.totalorder %s268, %s271
      %p277 = scmp.eq.s32.totalorder %s17, 0
      %p278 = por %p276, %p277
      %p279 = scmp.ne.s32.totalorder %s268, %s271
      %p280 = scmp.eq.s32.totalorder %s22, 1
      %p281 = por %p279, %p280
      %p282 = scmp.ne.s32.totalorder %s271, %s272
      %p283 = scmp.eq.s32.totalorder %s22, 0
      %p284 = por %p282, %p283
      %p285 = scmp.ne.s32.totalorder %s271, %s272
      %p286 = scmp.eq.s32.totalorder %s23, 1
      %p287 = por %p285, %p286
      %p289 = scmp.ne.s32.totalorder %s272, %s288
      %p290 = scmp.eq.s32.totalorder %s23, 0
      %p291 = por %p289, %p290
      %p292 = scmp.le.s32.totalorder 1, %s17
      %p293 = scmp.lt.s32.totalorder %s17, 3
      %p294 = pnand %p292, %p293
      %p295 = pneg %p294
      // Predicated region
      $region9: #{tpu_custom_call.1} parent=5 // pred_check
        _
      $region10: #{tpu_custom_call.1} parent=5 // pred_check_branch
        %297 = sbr.rel (%p294) target = $region12
      $region11: #{tpu_custom_call.1} parent=5 // pred_region
        %s298 = ssub.s32 %s17, 1
        // Predicated region
        $region13: #{tpu_custom_call.1} parent=11 // pred_check
          %p299 = pneg %p90
        $region14: #{tpu_custom_call.1} parent=11 // pred_check_branch
          %301 = sbr.rel (%p299) target = $region16
        $region15: #{tpu_custom_call.1} parent=11 // pred_region
          _
        $region16: #{tpu_custom_call.1} parent=11 // pred_fallthru
          _
        // Predicated region
        $region17: #{tpu_custom_call.1} parent=11 // pred_check
          %p302 = pneg %p111
        $region18: #{tpu_custom_call.1} parent=11 // pred_check_branch
          %304 = sbr.rel (%p302) target = $region20
        $region19: #{tpu_custom_call.1} parent=11 // pred_region
          _
        $region20: #{tpu_custom_call.1} parent=11 // pred_fallthru
          _
        // Predicated region
        $region21: #{tpu_custom_call.1} parent=11 // pred_check
          %p305 = pneg %p132
        $region22: #{tpu_custom_call.1} parent=11 // pred_check_branch
          %307 = sbr.rel (%p305) target = $region24
        $region23: #{tpu_custom_call.1} parent=11 // pred_region
          _
        $region24: #{tpu_custom_call.1} parent=11 // pred_fallthru
          _
        // Predicated region
        $region25: #{tpu_custom_call.1} parent=11 // pred_check
          %p308 = pneg %p153
        $region26: #{tpu_custom_call.1} parent=11 // pred_check_branch
          %310 = sbr.rel (%p308) target = $region28
        $region27: #{tpu_custom_call.1} parent=11 // pred_region
          _
        $region28: #{tpu_custom_call.1} parent=11 // pred_fallthru
          _
        // Predicated region
        $region29: #{tpu_custom_call.1} parent=11 // pred_check
          %p311 = pneg %p174
        $region30: #{tpu_custom_call.1} parent=11 // pred_check_branch
          %313 = sbr.rel (%p311) target = $region32
        $region31: #{tpu_custom_call.1} parent=11 // pred_region
          _
        $region32: #{tpu_custom_call.1} parent=11 // pred_fallthru
          _
        // Predicated region
        $region33: #{tpu_custom_call.1} parent=11 // pred_check
          %p314 = pneg %p195
        $region34: #{tpu_custom_call.1} parent=11 // pred_check_branch
          %316 = sbr.rel (%p314) target = $region36
        $region35: #{tpu_custom_call.1} parent=11 // pred_region
          _
        $region36: #{tpu_custom_call.1} parent=11 // pred_fallthru
          _
        // Predicated region
        $region37: #{tpu_custom_call.1} parent=11 // pred_check
          %p317 = pneg %p216
        $region38: #{tpu_custom_call.1} parent=11 // pred_check_branch
          %319 = sbr.rel (%p317) target = $region40
        $region39: #{tpu_custom_call.1} parent=11 // pred_region
          _
        $region40: #{tpu_custom_call.1} parent=11 // pred_fallthru
          _
        // Predicated region
        $region41: #{tpu_custom_call.1} parent=11 // pred_check
          %p320 = pneg %p237
        $region42: #{tpu_custom_call.1} parent=11 // pred_check_branch
          %322 = sbr.rel (%p320) target = $region44
        $region43: #{tpu_custom_call.1} parent=11 // pred_region
          _
        $region44: #{tpu_custom_call.1} parent=11 // pred_fallthru
          _
        // Predicated region
        $region45: #{tpu_custom_call.1} parent=11 // pred_check
          %p323 = pneg %p258
        $region46: #{tpu_custom_call.1} parent=11 // pred_check_branch
          %325 = sbr.rel (%p323) target = $region48
        $region47: #{tpu_custom_call.1} parent=11 // pred_region
          _
        $region48: #{tpu_custom_call.1} parent=11 // pred_fallthru
          _
      $region12: #{tpu_custom_call.1} parent=5 // pred_fallthru
        _
      %p326 = scmp.lt.s32.totalorder %s17, 2
      // Predicated region
      $region49: #{tpu_custom_call.1} parent=5 // pred_check
        %p327 = pneg %p326
      $region50: #{tpu_custom_call.1} parent=5 // pred_check_branch
        %329 = sbr.rel (%p327) target = $region52
      $region51: #{tpu_custom_call.1} parent=5 // pred_region
        // Predicated region
        $region53: #{tpu_custom_call.1} parent=51 // pred_check
          %p330 = pneg %p37
        $region54: #{tpu_custom_call.1} parent=51 // pred_check_branch
          %332 = sbr.rel (%p330) target = $region56
        $region55: #{tpu_custom_call.1} parent=51 // pred_region
          %s333 = smul.u32 4, %s17
          %s334 = ssub.s32 5, %s333
          %p335 = scmp.lt.s32.totalorder %s334, 4
          %s336 = scalar_select %p335, %s334, 4
          %s337 = smul.u32 128, %s336
          %p338 = scmp.lt.s32.totalorder %s333, 4
          %s339 = scalar_select %p338, %s333, 4
          %s340 = smul.addr %s339, 8
          %s341 = scalar_lea.vmem %s0, %s340
          %s342 = smul.u32 4, %s17
          %s343 = ssub.s32 5, %s342
          %p344 = scmp.lt.s32.totalorder %s343, 4
          %s345 = scalar_select %p344, %s343, 4
          %s346 = smul.u32 128, %s345
        $region56: #{tpu_custom_call.1} parent=51 // pred_fallthru
          _
        // Predicated region
        $region57: #{tpu_custom_call.1} parent=51 // pred_check
          %p347 = pneg %p63
        $region58: #{tpu_custom_call.1} parent=51 // pred_check_branch
          %349 = sbr.rel (%p347) target = $region60
        $region59: #{tpu_custom_call.1} parent=51 // pred_region
          %s350 = smul.u32 4, %s17
          %s351 = ssub.s32 5, %s350
          %p352 = scmp.lt.s32.totalorder %s351, 4
          %s353 = scalar_select %p352, %s351, 4
          %s354 = smul.u32 128, %s353
          %p355 = scmp.lt.s32.totalorder %s350, 4
          %s356 = scalar_select %p355, %s350, 4
          %s357 = smul.addr %s356, 8
          %s358 = scalar_lea.vmem %s1, %s357
          %s359 = smul.u32 4, %s17
          %s360 = ssub.s32 5, %s359
          %p361 = scmp.lt.s32.totalorder %s360, 4
          %s362 = scalar_select %p361, %s360, 4
          %s363 = smul.u32 128, %s362
        $region60: #{tpu_custom_call.1} parent=51 // pred_fallthru
          _
      $region52: #{tpu_custom_call.1} parent=5 // pred_fallthru
        _
      %p364 = scmp.le.s32.totalorder 1, %s17
      %p365 = scmp.lt.s32.totalorder %s17, 3
      %p366 = pnand %p364, %p365
      %p367 = pneg %p366
      // Predicated region
      $region61: #{tpu_custom_call.1} parent=5 // pred_check
        _
      $region62: #{tpu_custom_call.1} parent=5 // pred_check_branch
        %369 = sbr.rel (%p366) target = $region64
      $region63: #{tpu_custom_call.1} parent=5 // pred_region
        %s370 = ssub.s32 %s17, 1
        %s371 = smul.u32 4, %s22
        %s372 = ssub.s32 5, %s371
        %p373 = scmp.lt.s32.totalorder %s372, 4
        %s374 = scalar_select %p373, %s372, 4
        %s375 = smul.u32 128, %s374
        %p376 = scmp.lt.s32.totalorder %s371, 4
        %s377 = scalar_select %p376, %s371, 4
        %s378 = smul.addr %s377, 8
        %s379 = scalar_lea.vmem %s0, %s378
        %p380 = pneg %p43
        %p381 = pneg %p40
        %s382 = smul.u32 4, %s22
        %s383 = ssub.s32 5, %s382
        %p384 = scmp.lt.s32.totalorder %s383, 4
        %s385 = scalar_select %p384, %s383, 4
        %s386 = smul.u32 128, %s385
        %p387 = scmp.lt.s32.totalorder %s382, 4
        %s388 = scalar_select %p387, %s382, 4
        %s389 = smul.addr %s388, 8
        %s390 = scalar_lea.vmem %s1, %s389
        %p391 = pneg %p69
        %p392 = pneg %p66
        %p393 = pneg %p90
        %p394 = pneg %p87
        %p395 = pneg %p111
        %p396 = pneg %p108
        %p397 = pneg %p132
        %p398 = pneg %p129
        %p399 = pneg %p153
        %p400 = pneg %p150
        %p401 = pneg %p174
        %p402 = pneg %p171
        %p403 = pneg %p195
        %p404 = pneg %p192
        %p405 = pneg %p216
        %p406 = pneg %p213
        %p407 = pneg %p237
        %p408 = pneg %p234
        %p409 = pneg %p258
        %p410 = pneg %p255
        %p411 = pneg %p284
        %p412 = pneg %p281
        %s413 = sand.u32 %s271, 1
        %s414 = sand.u32 %s271, 1
        %s415 = smul.addr %s414, 32
        %s416 = scalar_lea.vmem [#allocation2], %s415
        %s417 = smul.u32 4, %s22
        %s418 = ssub.s32 5, %s417
        %p419 = scmp.lt.s32.totalorder %s418, 4
        %s420 = scalar_select %p419, %s418, 4
        %s421 = smul.u32 128, %s420
        %p422 = scmp.lt.s32.totalorder %s417, 4
        %s423 = scalar_select %p422, %s417, 4
        %s424 = smul.addr %s423, 8
        %s425 = scalar_lea.vmem %s0, %s424
        %s426 = smul.u32 4, %s22
        %s427 = ssub.s32 5, %s426
        %p428 = scmp.lt.s32.totalorder %s427, 4
        %s429 = scalar_select %p428, %s427, 4
        %s430 = smul.u32 128, %s429
        %s431 = smul.u32 4, %s22
        %s432 = ssub.s32 5, %s431
        %p433 = scmp.lt.s32.totalorder %s432, 4
        %s434 = scalar_select %p433, %s432, 4
        %s435 = smul.u32 128, %s434
        %p436 = scmp.lt.s32.totalorder %s431, 4
        %s437 = scalar_select %p436, %s431, 4
        %s438 = smul.addr %s437, 8
        %s439 = scalar_lea.vmem %s1, %s438
        %s440 = smul.u32 4, %s22
        %s441 = ssub.s32 5, %s440
        %p442 = scmp.lt.s32.totalorder %s441, 4
        %s443 = scalar_select %p442, %s441, 4
        %s444 = smul.u32 128, %s443
        %s445 = smul.u32 4, %s22
        %s446 = ssub.s32 5, %s445
        %p447 = scmp.lt.s32.totalorder %s446, 4
        %s448 = scalar_select %p447, %s446, 4
        %s449 = smul.u32 128, %s448
        %v451 = vld [vmem:[%s425] sm:$0xff]
        %v452 = vld [vmem:[%s425 + $0x8] sm:$0xff]
        %v453 = vld [vmem:[%s425 + $0x10] sm:$0xff]
        %v454 = vld [vmem:[%s425 + $0x18] sm:$0xff]
        %v455 = vpack.c.bf16 %v452, %v451
        %v456 = vpack.c.bf16 %v454, %v453
        %v457 = vld [vmem:[%s439] sm:$0xff]
        %v458 = vld [vmem:[%s439 + $0x8] sm:$0xff]
        %v459 = vld [vmem:[%s439 + $0x10] sm:$0xff]
        %v460 = vld [vmem:[%s439 + $0x18] sm:$0xff]
        %v461 = vpack.c.bf16 %v458, %v457
        %v462 = vpack.c.bf16 %v460, %v459
        %v463 = vld [vmem:[%s2] sm:$0xf]
        %v464 = vld [vmem:[%s2 + $0x4] sm:$0xf]
        %v465 = vld [vmem:[%s2 + $0x8] sm:$0xf]
        %v466 = vld [vmem:[%s2 + $0xc] sm:$0xf]
        %v467 = vld [vmem:[%s3] sm:$0xf]
        %v468 = vld [vmem:[%s3 + $0x4] sm:$0xf]
        %v469 = vld [vmem:[%s3 + $0x8] sm:$0xf]
        %v470 = vld [vmem:[%s3 + $0xc] sm:$0xf]
        %v475 = vunpack.c.l.b16 %v467
        %v476 = vunpack.c.l.b16 %v468
        %v477 = vunpack.c.l.b16 %v469
        %v478 = vunpack.c.l.b16 %v470
        %v479 = vpack.c.b16 %v476, %v475
        %v480 = vpack.c.b16 %v478, %v477
        %vm483 = vcmask 261120
        %v485 = vsel %vm483, %v461, 0
        %v488 = vsel %vm483, %v462, 0
        %490 = vmatprep.subr.bf16.mxu0 0
        %491 = vmatpush1.bf16.msra.mxu0 %v479
        %492 = vmatprep.subr.bf16.mxu0 0
        %493 = vmatpush1.bf16.msra.mxu0 %v480
        %494 = vmatprep.subr.bf16.mxu0 0
        %495 = vmatpush1.bf16.msra.mxu0 0
        %496 = vmatprep.subr.bf16.mxu0 0
        %497 = vmatpush1.bf16.msra.mxu0 0
        %498 = vmatprep.subr.bf16.mxu0 0
        %499 = vmatpush1.bf16.msra.mxu0 0
        %500 = vmatprep.subr.bf16.mxu0 0
        %501 = vmatpush1.bf16.msra.mxu0 0
        %502 = vmatprep.subr.bf16.mxu0 0
        %503 = vmatpush1.bf16.msra.mxu0 0
        %504 = vmatprep.subr.bf16.mxu0 0
        %505 = vmatpush1.bf16.msra.mxu0 0
        %506 = vmatprep.subr.bf16.mxu0 0
        %507 = vmatpush1.bf16.msra.mxu0 0
        %508 = vmatprep.subr.bf16.mxu0 0
        %509 = vmatpush1.bf16.msra.mxu0 0
        %510 = vmatprep.subr.bf16.mxu0 0
        %511 = vmatpush1.bf16.msra.mxu0 0
        %512 = vmatprep.subr.bf16.mxu0 0
        %513 = vmatpush1.bf16.msra.mxu0 0
        %514 = vmatprep.subr.bf16.mxu0 0
        %515 = vmatpush1.bf16.msra.mxu0 0
        %516 = vmatprep.subr.bf16.mxu0 0
        %517 = vmatpush1.bf16.msra.mxu0 0
        %518 = vmatprep.subr.bf16.mxu0 0
        %519 = vmatpush1.bf16.msra.mxu0 0
        %520 = vmatprep.subr.bf16.mxu0 0
        %521 = vmatpush1.bf16.msra.mxu0 0
        %522 = vmatprep.mubr.bf16.mxu0 0
        %523 = vmatmul.mubr.bf16.gmra.mrb[0].mxu0 %v485
        %v524 = vpop.f32.mrb[0].mxu0
        %v525 = vadd.f32 0.0, %v524
        %v526 = vpop.f32.mrb[0].mxu0
        %v527 = vpop.f32.mrb[0].mxu0
        %v528 = vadd.f32 0.0, %v527
        %v529 = vpop.f32.mrb[0].mxu0
        %530 = vmatprep.mubr.bf16.mxu0 0
        %531 = vmatmul.mubr.bf16.gmra.mrb[0].mxu0 %v488
        %v532 = vpop.f32.mrb[0].mxu0
        %v533 = vadd.f32 0.0, %v532
        %v534 = vpop.f32.mrb[0].mxu0
        %v535 = vpop.f32.mrb[0].mxu0
        %v536 = vadd.f32 0.0, %v535
        %v537 = vpop.f32.mrb[0].mxu0
        %538 = vdwg.mxu0
        %v543 = vunpack.c.l.b16 %v463
        %v544 = vunpack.c.l.b16 %v464
        %v545 = vunpack.c.l.b16 %v465
        %v546 = vunpack.c.l.b16 %v466
        %v547 = vpack.c.b16 %v544, %v543
        %v548 = vpack.c.b16 %v546, %v545
        %v552 = vsel %vm483, %v455, 0
        %v555 = vsel %vm483, %v456, 0
        %557 = vmatprep.subr.bf16.mxu0 0
        %558 = vmatpush1.bf16.msra.mxu0 %v547
        %559 = vmatprep.subr.bf16.mxu0 0
        %560 = vmatpush1.bf16.msra.mxu0 %v548
        %561 = vmatprep.subr.bf16.mxu0 0
        %562 = vmatpush1.bf16.msra.mxu0 0
        %563 = vmatprep.subr.bf16.mxu0 0
        %564 = vmatpush1.bf16.msra.mxu0 0
        %565 = vmatprep.subr.bf16.mxu0 0
        %566 = vmatpush1.bf16.msra.mxu0 0
        %567 = vmatprep.subr.bf16.mxu0 0
        %568 = vmatpush1.bf16.msra.mxu0 0
        %569 = vmatprep.subr.bf16.mxu0 0
        %570 = vmatpush1.bf16.msra.mxu0 0
        %571 = vmatprep.subr.bf16.mxu0 0
        %572 = vmatpush1.bf16.msra.mxu0 0
        %573 = vmatprep.subr.bf16.mxu0 0
        %574 = vmatpush1.bf16.msra.mxu0 0
        %575 = vmatprep.subr.bf16.mxu0 0
        %576 = vmatpush1.bf16.msra.mxu0 0
        %577 = vmatprep.subr.bf16.mxu0 0
        %578 = vmatpush1.bf16.msra.mxu0 0
        %579 = vmatprep.subr.bf16.mxu0 0
        %580 = vmatpush1.bf16.msra.mxu0 0
        %581 = vmatprep.subr.bf16.mxu0 0
        %582 = vmatpush1.bf16.msra.mxu0 0
        %583 = vmatprep.subr.bf16.mxu0 0
        %584 = vmatpush1.bf16.msra.mxu0 0
        %585 = vmatprep.subr.bf16.mxu0 0
        %586 = vmatpush1.bf16.msra.mxu0 0
        %587 = vmatprep.subr.bf16.mxu0 0
        %588 = vmatpush1.bf16.msra.mxu0 0
        %589 = vmatprep.mubr.bf16.mxu0 0
        %590 = vmatmul.mubr.bf16.gmra.mrb[0].mxu0 %v552
        %v591 = vpop.f32.mrb[0].mxu0
        %v592 = vadd.f32 %v525, %v591
        %v593 = vpop.f32.mrb[0].mxu0
        %v594 = vpop.f32.mrb[0].mxu0
        %v595 = vadd.f32 %v528, %v594
        %v596 = vpop.f32.mrb[0].mxu0
        %597 = vmatprep.mubr.bf16.mxu0 0
        %598 = vmatmul.mubr.bf16.gmra.mrb[0].mxu0 %v555
        %v599 = vpop.f32.mrb[0].mxu0
        %v600 = vadd.f32 %v533, %v599
        %v601 = vpop.f32.mrb[0].mxu0
        %v602 = vpop.f32.mrb[0].mxu0
        %v603 = vadd.f32 %v536, %v602
        %v604 = vpop.f32.mrb[0].mxu0
        %605 = vdwg.mxu0
        %v606 = vld [vmem:[%s4] sm:$0x1]
        %v608 = vlaneseq
        %v609 = vshrl.u32 %v608, 7
        %v610 = vsub.s32 0, %v609
        %v611 = vrot.slane %v606, %v610
        %v613 = vadd.f32 %v592, %v611
        %v614 = vadd.f32 %v595, %v611
        %v615 = vadd.f32 %v600, %v611
        %v616 = vadd.f32 %v603, %v611
        %v617 = vld [vmem:[%s5] sm:$0x1]
        %v618 = vlaneseq
        %v619 = vshrl.u32 %v618, 7
        %v620 = vsub.s32 0, %v619
        %v621 = vrot.slane %v617, %v620
        %v622 = vmul.f32 %v613, %v621
        %v623 = vmul.f32 %v614, %v621
        %v624 = vmul.f32 %v615, %v621
        %v625 = vmul.f32 %v616, %v621
        %v626 = vld [vmem:[%s6] sm:$0x1]
        %v627 = vlaneseq
        %v628 = vshrl.u32 %v627, 7
        %v629 = vsub.s32 0, %v628
        %v630 = vrot.slane %v626, %v629
        %v631 = vadd.f32 %v622, %v630
        %v632 = vadd.f32 %v623, %v630
        %v633 = vadd.f32 %v624, %v630
        %v634 = vadd.f32 %v625, %v630
        %v635 = vld [vmem:[%s7] sm:$0x1]
        %v636 = vlaneseq
        %v637 = vshrl.u32 %v636, 7
        %v638 = vsub.s32 0, %v637
        %v639 = vrot.slane %v635, %v638
        %v640 = vmul.f32 %v631, %v639
        %v641 = vmul.f32 %v632, %v639
        %v642 = vmul.f32 %v633, %v639
        %v643 = vmul.f32 %v634, %v639
        %644 = vadd.xlane.f32.xlu0 %v640
        %v645 = vpop.xlane.xlu0 %644
        %646 = vadd.xlane.f32.xlu0 %v641
        %v647 = vpop.xlane.xlu0 %646
        %648 = vadd.xlane.f32.xlu0 %v642
        %v649 = vpop.xlane.xlu0 %648
        %650 = vadd.xlane.f32.xlu0 %v643
        %v651 = vpop.xlane.xlu0 %650
        %v652 = vmul.f32 %v631, %v645
        %v653 = vmul.f32 %v632, %v647
        %v654 = vmul.f32 %v633, %v649
        %v655 = vmul.f32 %v634, %v651
        %v656 = vld [vmem:[%s8] sm:$0x1]
        %v657 = vlaneseq
        %v658 = vshrl.u32 %v657, 7
        %v659 = vsub.s32 0, %v658
        %v660 = vrot.slane %v656, %v659
        %v661 = vadd.f32 %v652, %v660
        %v662 = vadd.f32 %v653, %v660
        %v663 = vadd.f32 %v654, %v660
        %v664 = vadd.f32 %v655, %v660
        %v665 = vadd.f32 %v661, %v631
        %v666 = vadd.f32 %v662, %v632
        %v667 = vadd.f32 %v663, %v633
        %v668 = vadd.f32 %v664, %v634
        %v669 = vld [vmem:[%s5 + $0x1] sm:$0x1]
        %v670 = vlaneseq
        %v671 = vshrl.u32 %v670, 7
        %v672 = vsub.s32 0, %v671
        %v673 = vrot.slane %v669, %v672
        %v674 = vmul.f32 %v665, %v673
        %v675 = vmul.f32 %v666, %v673
        %v676 = vmul.f32 %v667, %v673
        %v677 = vmul.f32 %v668, %v673
        %v678 = vld [vmem:[%s6 + $0x1] sm:$0x1]
        %v679 = vlaneseq
        %v680 = vshrl.u32 %v679, 7
        %v681 = vsub.s32 0, %v680
        %v682 = vrot.slane %v678, %v681
        %v683 = vadd.f32 %v674, %v682
        %v684 = vadd.f32 %v675, %v682
        %v685 = vadd.f32 %v676, %v682
        %v686 = vadd.f32 %v677, %v682
        %v687 = vld [vmem:[%s7 + $0x1] sm:$0x1]
        %v688 = vlaneseq
        %v689 = vshrl.u32 %v688, 7
        %v690 = vsub.s32 0, %v689
        %v691 = vrot.slane %v687, %v690
        %v692 = vmul.f32 %v683, %v691
        %v693 = vmul.f32 %v684, %v691
        %v694 = vmul.f32 %v685, %v691
        %v695 = vmul.f32 %v686, %v691
        %696 = vadd.xlane.f32.xlu0 %v692
        %v697 = vpop.xlane.xlu0 %696
        %698 = vadd.xlane.f32.xlu0 %v693
        %v699 = vpop.xlane.xlu0 %698
        %700 = vadd.xlane.f32.xlu0 %v694
        %v701 = vpop.xlane.xlu0 %700
        %702 = vadd.xlane.f32.xlu0 %v695
        %v703 = vpop.xlane.xlu0 %702
        %v704 = vmul.f32 %v631, %v697
        %v705 = vmul.f32 %v632, %v699
        %v706 = vmul.f32 %v633, %v701
        %v707 = vmul.f32 %v634, %v703
        %v708 = vld [vmem:[%s8 + $0x1] sm:$0x1]
        %v709 = vlaneseq
        %v710 = vshrl.u32 %v709, 7
        %v711 = vsub.s32 0, %v710
        %v712 = vrot.slane %v708, %v711
        %v713 = vadd.f32 %v704, %v712
        %v714 = vadd.f32 %v705, %v712
        %v715 = vadd.f32 %v706, %v712
        %v716 = vadd.f32 %v707, %v712
        %v717 = vadd.f32 %v713, %v683
        %v718 = vadd.f32 %v714, %v684
        %v719 = vadd.f32 %v715, %v685
        %v720 = vadd.f32 %v716, %v686
        %v721 = vld [vmem:[%s5 + $0x2] sm:$0x1]
        %v722 = vlaneseq
        %v723 = vshrl.u32 %v722, 7
        %v724 = vsub.s32 0, %v723
        %v725 = vrot.slane %v721, %v724
        %v726 = vmul.f32 %v717, %v725
        %v727 = vmul.f32 %v718, %v725
        %v728 = vmul.f32 %v719, %v725
        %v729 = vmul.f32 %v720, %v725
        %v730 = vld [vmem:[%s6 + $0x2] sm:$0x1]
        %v731 = vlaneseq
        %v732 = vshrl.u32 %v731, 7
        %v733 = vsub.s32 0, %v732
        %v734 = vrot.slane %v730, %v733
        %v735 = vadd.f32 %v726, %v734
        %v736 = vadd.f32 %v727, %v734
        %v737 = vadd.f32 %v728, %v734
        %v738 = vadd.f32 %v729, %v734
        %v739 = vld [vmem:[%s7 + $0x2] sm:$0x1]
        %v740 = vlaneseq
        %v741 = vshrl.u32 %v740, 7
        %v742 = vsub.s32 0, %v741
        %v743 = vrot.slane %v739, %v742
        %v744 = vmul.f32 %v735, %v743
        %v745 = vmul.f32 %v736, %v743
        %v746 = vmul.f32 %v737, %v743
        %v747 = vmul.f32 %v738, %v743
        %748 = vadd.xlane.f32.xlu0 %v744
        %v749 = vpop.xlane.xlu0 %748
        %750 = vadd.xlane.f32.xlu0 %v745
        %v751 = vpop.xlane.xlu0 %750
        %752 = vadd.xlane.f32.xlu0 %v746
        %v753 = vpop.xlane.xlu0 %752
        %754 = vadd.xlane.f32.xlu0 %v747
        %v755 = vpop.xlane.xlu0 %754
        %v756 = vmul.f32 %v631, %v749
        %v757 = vmul.f32 %v632, %v751
        %v758 = vmul.f32 %v633, %v753
        %v759 = vmul.f32 %v634, %v755
        %v760 = vld [vmem:[%s8 + $0x2] sm:$0x1]
        %v761 = vlaneseq
        %v762 = vshrl.u32 %v761, 7
        %v763 = vsub.s32 0, %v762
        %v764 = vrot.slane %v760, %v763
        %v765 = vadd.f32 %v756, %v764
        %v766 = vadd.f32 %v757, %v764
        %v767 = vadd.f32 %v758, %v764
        %v768 = vadd.f32 %v759, %v764
        %v769 = vadd.f32 %v765, %v735
        %v770 = vadd.f32 %v766, %v736
        %v771 = vadd.f32 %v767, %v737
        %v772 = vadd.f32 %v768, %v738
        %v773 = vld [vmem:[%s5 + $0x3] sm:$0x1]
        %v774 = vlaneseq
        %v775 = vshrl.u32 %v774, 7
        %v776 = vsub.s32 0, %v775
        %v777 = vrot.slane %v773, %v776
        %v778 = vmul.f32 %v769, %v777
        %v779 = vmul.f32 %v770, %v777
        %v780 = vmul.f32 %v771, %v777
        %v781 = vmul.f32 %v772, %v777
        %v782 = vld [vmem:[%s6 + $0x3] sm:$0x1]
        %v783 = vlaneseq
        %v784 = vshrl.u32 %v783, 7
        %v785 = vsub.s32 0, %v784
        %v786 = vrot.slane %v782, %v785
        %v787 = vadd.f32 %v778, %v786
        %v788 = vadd.f32 %v779, %v786
        %v789 = vadd.f32 %v780, %v786
        %v790 = vadd.f32 %v781, %v786
        %v791 = vpack.c.bf16 %v788, %v787
        %v792 = vpack.c.bf16 %v790, %v789
        %v793 = vld [vmem:[%s9] sm:$0xf]
        %v794 = vld [vmem:[%s9 + $0x4] sm:$0xf]
        %v795 = vld [vmem:[%s9 + $0x8] sm:$0xf]
        %v796 = vld [vmem:[%s9 + $0xc] sm:$0xf]
        %v797 = vld [vmem:[%s9 + $0x10] sm:$0xf]
        %v798 = vld [vmem:[%s9 + $0x14] sm:$0xf]
        %v799 = vld [vmem:[%s9 + $0x18] sm:$0xf]
        %v800 = vld [vmem:[%s9 + $0x1c] sm:$0xf]
        %v801 = vld [vmem:[%s9 + $0x20] sm:$0xf]
        %v802 = vld [vmem:[%s9 + $0x24] sm:$0xf]
        %v803 = vld [vmem:[%s9 + $0x28] sm:$0xf]
        %v804 = vld [vmem:[%s9 + $0x2c] sm:$0xf]
        %v805 = vld [vmem:[%s9 + $0x30] sm:$0xf]
        %v806 = vld [vmem:[%s9 + $0x34] sm:$0xf]
        %v807 = vld [vmem:[%s9 + $0x38] sm:$0xf]
        %v808 = vld [vmem:[%s9 + $0x3c] sm:$0xf]
        %v809 = vld [vmem:[%s10] sm:$0x1]
        %v811 = vlaneseq
        %v812 = vshrl.u32 %v811, 7
        %v813 = vsub.s32 0, %v812
        %v814 = vrot.slane %v809, %v813
        %v832 = vunpack.c.l.b16 %v793
        %v833 = vunpack.c.l.b16 %v794
        %v834 = vunpack.c.l.b16 %v795
        %v835 = vunpack.c.l.b16 %v796
        %v836 = vunpack.c.l.b16 %v797
        %v837 = vunpack.c.l.b16 %v798
        %v838 = vunpack.c.l.b16 %v799
        %v839 = vunpack.c.l.b16 %v800
        %v840 = vunpack.c.l.b16 %v801
        %v841 = vunpack.c.l.b16 %v802
        %v842 = vunpack.c.l.b16 %v803
        %v843 = vunpack.c.l.b16 %v804
        %v844 = vunpack.c.l.b16 %v805
        %v845 = vunpack.c.l.b16 %v806
        %v846 = vunpack.c.l.b16 %v807
        %v847 = vunpack.c.l.b16 %v808
        %v848 = vpack.c.b16 %v833, %v832
        %v849 = vpack.c.b16 %v835, %v834
        %v850 = vpack.c.b16 %v837, %v836
        %v851 = vpack.c.b16 %v839, %v838
        %v852 = vpack.c.b16 %v841, %v840
        %v853 = vpack.c.b16 %v843, %v842
        %v854 = vpack.c.b16 %v845, %v844
        %v855 = vpack.c.b16 %v847, %v846
        %864 = vmatprep.subr.bf16.mxu0 0
        %865 = vmatpush1.bf16.msra.mxu0 %v848
        %866 = vmatprep.subr.bf16.mxu0 0
        %867 = vmatpush1.bf16.msra.mxu0 %v849
        %868 = vmatprep.subr.bf16.mxu0 0
        %869 = vmatpush1.bf16.msra.mxu0 %v850
        %870 = vmatprep.subr.bf16.mxu0 0
        %871 = vmatpush1.bf16.msra.mxu0 %v851
        %872 = vmatprep.subr.bf16.mxu0 0
        %873 = vmatpush1.bf16.msra.mxu0 %v852
        %874 = vmatprep.subr.bf16.mxu0 0
        %875 = vmatpush1.bf16.msra.mxu0 %v853
        %876 = vmatprep.subr.bf16.mxu0 0
        %877 = vmatpush1.bf16.msra.mxu0 %v854
        %878 = vmatprep.subr.bf16.mxu0 0
        %879 = vmatpush1.bf16.msra.mxu0 %v855
        %880 = vmatprep.subr.bf16.mxu0 0
        %881 = vmatpush1.bf16.msra.mxu0 0
        %882 = vmatprep.subr.bf16.mxu0 0
        %883 = vmatpush1.bf16.msra.mxu0 0
        %884 = vmatprep.subr.bf16.mxu0 0
        %885 = vmatpush1.bf16.msra.mxu0 0
        %886 = vmatprep.subr.bf16.mxu0 0
        %887 = vmatpush1.bf16.msra.mxu0 0
        %888 = vmatprep.subr.bf16.mxu0 0
        %889 = vmatpush1.bf16.msra.mxu0 0
        %890 = vmatprep.subr.bf16.mxu0 0
        %891 = vmatpush1.bf16.msra.mxu0 0
        %892 = vmatprep.subr.bf16.mxu0 0
        %893 = vmatpush1.bf16.msra.mxu0 0
        %894 = vmatprep.subr.bf16.mxu0 0
        %895 = vmatpush1.bf16.msra.mxu0 0
        %896 = vmatprep.mubr.bf16.mxu0 0
        %897 = vmatmul.mubr.bf16.gmra.mrb[0].mxu0 %v791
        %v898 = vpop.f32.mrb[0].mxu0
        %v899 = vadd.f32 %v814, %v898
        %v900 = vpop.f32.mrb[0].mxu0
        %v901 = vpop.f32.mrb[0].mxu0
        %v902 = vadd.f32 %v814, %v901
        %v903 = vpop.f32.mrb[0].mxu0
        %904 = vmatprep.mubr.bf16.mxu0 0
        %905 = vmatmul.mubr.bf16.gmra.mrb[0].mxu0 %v792
        %v906 = vpop.f32.mrb[0].mxu0
        %v907 = vadd.f32 %v814, %v906
        %v908 = vpop.f32.mrb[0].mxu0
        %v909 = vpop.f32.mrb[0].mxu0
        %v910 = vadd.f32 %v814, %v909
        %v911 = vpop.f32.mrb[0].mxu0
        %912 = vdwg.mxu0
        %v913 = vmax.f32 %v899, 0.0
        %v914 = vmax.f32 %v902, 0.0
        %v915 = vmax.f32 %v907, 0.0
        %v916 = vmax.f32 %v910, 0.0
        %917 = vst.msk [vmem:[%s416] sm:$0xff] %vm483, %v913
        %918 = vst.msk [vmem:[%s416 + $0x8] sm:$0xff] %vm483, %v914
        %919 = vst.msk [vmem:[%s416 + $0x10] sm:$0xff] %vm483, %v915
        %920 = vst.msk [vmem:[%s416 + $0x18] sm:$0xff] %vm483, %v916
        %s921 = sand.u32 %s271, 1
        %s922 = sand.u32 %s271, 1
        %s923 = smul.addr %s922, 32
        %s924 = scalar_lea.vmem [#allocation2], %s923
        // Predicated region
        $region65: #{tpu_custom_call.1} parent=63 // pred_check
          %p925 = pneg %p281
        $region66: #{tpu_custom_call.1} parent=63 // pred_check_branch
          %927 = sbr.rel (%p925) target = $region68
        $region67: #{tpu_custom_call.1} parent=63 // pred_region
          %s928 = smul.u32 4, %s22
          %s929 = ssub.s32 5, %s928
          %p930 = scmp.lt.s32.totalorder %s929, 4
          %s931 = scalar_select %p930, %s929, 4
          %s932 = smul.u32 128, %s931
          %p933 = scmp.ne.s32.totalorder 0, %s932
          %s934 = smul.addr %s928, 8
          %s935 = scalar_lea.vmem %s11, %s934
          // Predicated region
          $region69: #{tpu_custom_call.1} parent=67 // pred_check
            %p936 = pneg %p933
          $region70: #{tpu_custom_call.1} parent=67 // pred_check_branch
            %938 = sbr.rel (%p936) target = $region72
          $region71: #{tpu_custom_call.1} parent=67 // pred_region
            // Predicated region
            $region73: #{tpu_custom_call.1} parent=71 // pred_check
              _
            $region74: #{tpu_custom_call.1} parent=71 // pred_check_branch
              %940 = sbr.rel (0) target = $region76
            $region75: #{tpu_custom_call.1} parent=71 // pred_region
              // Predicated region
              $region95: #{tpu_custom_call.1} parent=75 // pred_check
                _
              $region96: #{tpu_custom_call.1} parent=75 // pred_check_branch
                %995 = sbr.rel (0) target = $region98
              $region97: #{tpu_custom_call.1} parent=75 // pred_region
                %s996 = sshrl.u32 %s931, 2
                // While loop
                $region99: #{tpu_custom_call.1} parent=97 // loop_pre_header
                  _
                $region100: #{tpu_custom_call.1} parent=97 // loop_header
                  %s998 = sphi 0, %s1000
                  %p999 = scmp.ge.s32.totalorder %s998, %s996
                  %s1003 = sphi 0, %s1016
                  %s1004 = sphi %s924, %s1019
                  %s1005 = sphi %s935, %s1020
                $region101: #{tpu_custom_call.1} parent=97 // loop_header_branch
                  %1002 = sbr.rel (%p999) target = $region105
                $region102: #{tpu_custom_call.1} parent=97 // loop_body
                  %v1006 = vld [vmem:[%s1004] sm:$0xff]
                  %1007 = vst [vmem:[%s1005] sm:$0xff] %v1006
                  %v1008 = vld [vmem:[%s1004 + $0x8] sm:$0xff]
                  %1009 = vst [vmem:[%s1005 + $0x8] sm:$0xff] %v1008
                  %v1010 = vld [vmem:[%s1004 + $0x10] sm:$0xff]
                  %1011 = vst [vmem:[%s1005 + $0x10] sm:$0xff] %v1010
                  %v1012 = vld [vmem:[%s1004 + $0x18] sm:$0xff]
                  %1013 = vst [vmem:[%s1005 + $0x18] sm:$0xff] %v1012
                  %s1014 = sadd.s32 1, %s1003
                  %p1015 = scmp.ge.s32.totalorder %s1014, %s996
                  %s1016 = scalar_select %p1015, 0, %s1014
                  %s1017 = smul.u32 %s1016, 32
                  %s1018 = smul.u32 %s1016, 32
                  %s1019 = scalar_lea.vmem %s924, %s1017 [#allocation2]
                  %s1020 = scalar_lea.vmem %s935, %s1018
                $region103: #{tpu_custom_call.1} parent=97 // loop_footer
                  %s1000 = sadd.s32 %s998, 1
                $region104: #{tpu_custom_call.1} parent=97 // loop_footer_branch
                  %997 = sbr.rel target = $region100
                $region105: #{tpu_custom_call.1} parent=97 // loop_exit
                  _
                %s1021 = sshrl.u32 %s931, 2
                %s1022 = sand.u32 %s931, 3
                %s1023 = smul.u32 %s1021, 4
                %s1024 = smul.u32 8, %s1023
                %s1025 = scalar_lea.vmem %s924, %s1024 [#allocation2]
                %s1026 = smul.u32 8, %s1023
                %s1027 = scalar_lea.vmem %s935, %s1026
                // While loop
                $region106: #{tpu_custom_call.1} parent=97 // loop_pre_header
                  _
                $region107: #{tpu_custom_call.1} parent=97 // loop_header
                  %s1029 = sphi 0, %s1031
                  %p1030 = scmp.ge.s32.totalorder %s1029, %s1022
                  %s1034 = sphi 0, %s1041
                  %s1035 = sphi %s1025, %s1044
                  %s1036 = sphi %s1027, %s1045
                $region108: #{tpu_custom_call.1} parent=97 // loop_header_branch
                  %1033 = sbr.rel (%p1030) target = $region112
                $region109: #{tpu_custom_call.1} parent=97 // loop_body
                  %v1037 = vld [vmem:[%s1035] sm:$0xff]
                  %1038 = vst [vmem:[%s1036] sm:$0xff] %v1037
                  %s1039 = sadd.s32 1, %s1034
                  %p1040 = scmp.ge.s32.totalorder %s1039, %s1022
                  %s1041 = scalar_select %p1040, 0, %s1039
                  %s1042 = smul.u32 %s1041, 8
                  %s1043 = smul.u32 %s1041, 8
                  %s1044 = scalar_lea.vmem %s1025, %s1042 [#allocation2]
                  %s1045 = scalar_lea.vmem %s1027, %s1043
                $region110: #{tpu_custom_call.1} parent=97 // loop_footer
                  %s1031 = sadd.s32 %s1029, 1
                $region111: #{tpu_custom_call.1} parent=97 // loop_footer_branch
                  %1028 = sbr.rel target = $region107
                $region112: #{tpu_custom_call.1} parent=97 // loop_exit
                  _
              $region98: #{tpu_custom_call.1} parent=75 // pred_fallthru
                _
              // Predicated region
              $region113: #{tpu_custom_call.1} parent=75 // pred_check
                _
              $region114: #{tpu_custom_call.1} parent=75 // pred_check_branch
                %1047 = sbr.rel target = $region116
              $region115: #{tpu_custom_call.1} parent=75 // pred_region
                _
              $region116: #{tpu_custom_call.1} parent=75 // pred_fallthru
                _
            $region76: #{tpu_custom_call.1} parent=71 // pred_fallthru
              _
            // Predicated region
            $region77: #{tpu_custom_call.1} parent=71 // pred_check
              _
            $region78: #{tpu_custom_call.1} parent=71 // pred_check_branch
              %942 = sbr.rel target = $region80
            $region79: #{tpu_custom_call.1} parent=71 // pred_region
              %s944 = sshrl.u32 %s931, 2
              // While loop
              $region81: #{tpu_custom_call.1} parent=79 // loop_pre_header
                _
              $region82: #{tpu_custom_call.1} parent=79 // loop_header
                %s946 = sphi 0, %s948
                %p947 = scmp.ge.s32.totalorder %s946, %s944
                %s951 = sphi 0, %s964
                %s952 = sphi %s924, %s967
                %s953 = sphi %s935, %s968
              $region83: #{tpu_custom_call.1} parent=79 // loop_header_branch
                %950 = sbr.rel (%p947) target = $region87
              $region84: #{tpu_custom_call.1} parent=79 // loop_body
                %v954 = vld [vmem:[%s952] sm:$0xff]
                %955 = vst [vmem:[%s953] sm:$0xff] %v954
                %v956 = vld [vmem:[%s952 + $0x8] sm:$0xff]
                %957 = vst [vmem:[%s953 + $0x8] sm:$0xff] %v956
                %v958 = vld [vmem:[%s952 + $0x10] sm:$0xff]
                %959 = vst [vmem:[%s953 + $0x10] sm:$0xff] %v958
                %v960 = vld [vmem:[%s952 + $0x18] sm:$0xff]
                %961 = vst [vmem:[%s953 + $0x18] sm:$0xff] %v960
                %s962 = sadd.s32 1, %s951
                %p963 = scmp.ge.s32.totalorder %s962, %s944
                %s964 = scalar_select %p963, 0, %s962
                %s965 = smul.u32 %s964, 32
                %s966 = smul.u32 %s964, 32
                %s967 = scalar_lea.vmem %s924, %s965 [#allocation2]
                %s968 = scalar_lea.vmem %s935, %s966
              $region85: #{tpu_custom_call.1} parent=79 // loop_footer
                %s948 = sadd.s32 %s946, 1
              $region86: #{tpu_custom_call.1} parent=79 // loop_footer_branch
                %945 = sbr.rel target = $region82
              $region87: #{tpu_custom_call.1} parent=79 // loop_exit
                _
              %s969 = sshrl.u32 %s931, 2
              %s970 = sand.u32 %s931, 3
              %s971 = smul.u32 %s969, 4
              %s972 = smul.u32 8, %s971
              %s973 = scalar_lea.vmem %s924, %s972 [#allocation2]
              %s974 = smul.u32 8, %s971
              %s975 = scalar_lea.vmem %s935, %s974
              // While loop
              $region88: #{tpu_custom_call.1} parent=79 // loop_pre_header
                _
              $region89: #{tpu_custom_call.1} parent=79 // loop_header
                %s977 = sphi 0, %s979
                %p978 = scmp.ge.s32.totalorder %s977, %s970
                %s982 = sphi 0, %s989
                %s983 = sphi %s973, %s992
                %s984 = sphi %s975, %s993
              $region90: #{tpu_custom_call.1} parent=79 // loop_header_branch
                %981 = sbr.rel (%p978) target = $region94
              $region91: #{tpu_custom_call.1} parent=79 // loop_body
                %v985 = vld [vmem:[%s983] sm:$0xff]
                %986 = vst [vmem:[%s984] sm:$0xff] %v985
                %s987 = sadd.s32 1, %s982
                %p988 = scmp.ge.s32.totalorder %s987, %s970
                %s989 = scalar_select %p988, 0, %s987
                %s990 = smul.u32 %s989, 8
                %s991 = smul.u32 %s989, 8
                %s992 = scalar_lea.vmem %s973, %s990 [#allocation2]
                %s993 = scalar_lea.vmem %s975, %s991
              $region92: #{tpu_custom_call.1} parent=79 // loop_footer
                %s979 = sadd.s32 %s977, 1
              $region93: #{tpu_custom_call.1} parent=79 // loop_footer_branch
                %976 = sbr.rel target = $region89
              $region94: #{tpu_custom_call.1} parent=79 // loop_exit
                _
            $region80: #{tpu_custom_call.1} parent=71 // pred_fallthru
              _
          $region72: #{tpu_custom_call.1} parent=67 // pred_fallthru
            _
          %1048 = vnop
        $region68: #{tpu_custom_call.1} parent=63 // pred_fallthru
          _
      $region64: #{tpu_custom_call.1} parent=5 // pred_fallthru
        _
      %p1049 = scmp.le.s32.totalorder 2, %s17
      // Predicated region
      $region117: #{tpu_custom_call.1} parent=5 // pred_check
        %p1050 = pneg %p1049
      $region118: #{tpu_custom_call.1} parent=5 // pred_check_branch
        %1052 = sbr.rel (%p1050) target = $region120
      $region119: #{tpu_custom_call.1} parent=5 // pred_region
        %s1053 = ssub.s32 %s17, 2
        // Predicated region
        $region121: #{tpu_custom_call.1} parent=119 // pred_check
          %p1054 = pneg %p287
        $region122: #{tpu_custom_call.1} parent=119 // pred_check_branch
          %1056 = sbr.rel (%p1054) target = $region124
        $region123: #{tpu_custom_call.1} parent=119 // pred_region
          %s1057 = sand.u32 %s272, 1
          %s1058 = sand.u32 %s272, 1
          %s1059 = smul.addr %s1058, 32
          %s1060 = scalar_lea.vmem [#allocation2], %s1059
        $region124: #{tpu_custom_call.1} parent=119 // pred_fallthru
          _
      $region120: #{tpu_custom_call.1} parent=5 // pred_fallthru
        _
    $region6: #{tpu_custom_call.1} parent=1 // loop_footer
      %s21 = sadd.s32 1, %s17
    $region7: #{tpu_custom_call.1} parent=1 // loop_footer_branch
      %16 = sbr.rel target = $region3
    $region8: #{tpu_custom_call.1} parent=1 // loop_exit
      _

</llo_original>
